<compile_context>
chip_gen: v7x
topology: tpu7x:2x2x1
jax: 0.10.0
libtpu: 0.0.40
codegen_flags: <defaults>
</compile_context>

<pallas_src>
import functools

import jax
import jax.numpy as jnp
from jax.experimental import pallas as pl
from jax.experimental.pallas import tpu as pltpu


def _round_up(x, m):
    return (x + m - 1) // m * m


def _make_loss_kernel(H, W):
    """Kernel factory; H, W are the (unpadded) plane dims."""

    def kernel(pred_ref, targ_ref, acc_ref, pad_p, pad_t):
        # grid = (core_split, batch_blocks); axis 0 "parallel", axis 1 "arbitrary"
        b = pl.program_id(1)

        @pl.when(b == 0)
        def _():
            acc_ref[...] = jnp.zeros_like(acc_ref)
            # zero the halo scratch once per core / per core-split index; the
            # interior is overwritten every step, the 1-px border stays zero.
            pad_p[...] = jnp.zeros_like(pad_p)
            pad_t[...] = jnp.zeros_like(pad_t)

        pm = pred_ref[...]                      # (TB, H, W)
        tm = targ_ref[...]

        # build zero-padded planes in VMEM (replaces the old HBM-level jnp.pad)
        pad_p[:, 1:H + 1, 1:W + 1] = pm
        pad_t[:, 1:H + 1, 1:W + 1] = tm

        abs_diff = jnp.abs(pm - tm)                                   # L1 term
        rel_err = abs_diff * pl.reciprocal(tm + 1e-3, approx=True)    # relative term (EUP)

        def sobel_mag(xref):
            # F.conv2d is cross-correlation (no kernel flip), padding=1 (zero pad).
            x = xref[...]                        # (TB, H+2, W+2)
            gx = (-x[:, 0:H, 0:W] + x[:, 0:H, 2:W + 2]
                  - 2.0 * x[:, 1:H + 1, 0:W] + 2.0 * x[:, 1:H + 1, 2:W + 2]
                  - x[:, 2:H + 2, 0:W] + x[:, 2:H + 2, 2:W + 2])
            gy = (-x[:, 0:H, 0:W] - 2.0 * x[:, 0:H, 1:W + 1] - x[:, 0:H, 2:W + 2]
                  + x[:, 2:H + 2, 0:W] + 2.0 * x[:, 2:H + 2, 1:W + 1]
                  + x[:, 2:H + 2, 2:W + 2])
            return jnp.sqrt(gx * gx + gy * gy + 1e-8)

        grad_diff = jnp.abs(sobel_mag(pad_p) - sobel_mag(pad_t))      # gradient-mag L1 term

        # block-level tree reductions (one per metric, amortized over TB planes)
        l1_s = jnp.sum(abs_diff)
        grad_s = jnp.sum(grad_diff)
        rel_s = jnp.sum(rel_err)

        # fused lane-dense accumulator: row 0, lanes {0,1,2} of an (8,128) tile.
        lane = jax.lax.broadcasted_iota(jnp.int32, (8, 128), 1)
        row = jax.lax.broadcasted_iota(jnp.int32, (8, 128), 0)
        r0 = row == 0
        contrib = (jnp.where(r0 & (lane == 0), l1_s, 0.0)
                   + jnp.where(r0 & (lane == 1), grad_s, 0.0)
                   + jnp.where(r0 & (lane == 2), rel_s, 0.0))
        acc_ref[...] += contrib[None]

    return kernel


@functools.partial(jax.jit, static_argnames=("alpha", "beta", "gamma"))
def _loss_components(pred, target, alpha=1.0, beta=0.1, gamma=0.05):
    N, C, H, W = pred.shape
    assert C == 1, "sobel conv in the reference requires a single channel"

    p = pred.reshape(N, H, W).astype(jnp.float32)
    t = target.reshape(N, H, W).astype(jnp.float32)

    # ---- tile sizing: pack as many whole planes per block as fit ~2 MiB of
    #      (lane/sublane-padded) input; TB always divides N so every block is full.
    plane_bytes = _round_up(W, 128) * _round_up(H, 8) * 4
    budget_planes = max(1, (2 << 20) // plane_bytes)
    tb = 1
    for d in range(min(N, budget_planes), 0, -1):
        if N % d == 0:
            tb = d
            break
    # prefer an even number of batch blocks so both v7x TensorCores get work
    if (N // tb) % 2 == 1 and tb % 2 == 0:
        tb //= 2
    nb = N // tb                      # number of batch blocks (grid reduction axis)
    n_cores = 2 if nb % 2 == 0 else 1 # core-split axis (v7x dual TC; loop elsewhere)
    gb = nb // n_cores                # batch blocks handled per core

    def in_map(c, b):
        return (c * gb + b, 0, 0)

    cost = pl.CostEstimate(
        flops=int(64 * N * H * W),
        transcendentals=int(3 * N * H * W),
        bytes_accessed=int(2 * N * H * W * 4 + n_cores * 8 * 128 * 4),
    )

    acc = pl.pallas_call(
        _make_loss_kernel(H, W),
        out_shape=jax.ShapeDtypeStruct((n_cores, 8, 128), jnp.float32),
        grid_spec=pltpu.PrefetchScalarGridSpec(
            num_scalar_prefetch=0,
            grid=(n_cores, gb),
            in_specs=[
                pl.BlockSpec((tb, H, W), in_map),
                pl.BlockSpec((tb, H, W), in_map),
            ],
            out_specs=pl.BlockSpec((1, 8, 128), lambda c, b: (c, 0, 0)),
            scratch_shapes=[
                pltpu.VMEM((tb, H + 2, W + 2), jnp.float32),   # padded pred planes
                pltpu.VMEM((tb, H + 2, W + 2), jnp.float32),   # padded target planes
            ],
        ),
        compiler_params=pltpu.CompilerParams(
            dimension_semantics=("parallel", "arbitrary"),
            vmem_limit_bytes=48 * 1024 * 1024,
        ),
        cost_estimate=cost,
    )(p, t)

    # combine per-core partials (lanes 0..2 of row 0) and normalize to means
    sums = jnp.sum(acc[:, 0, :], axis=0)
    n_elems = jnp.float32(N * H * W)
    l1_loss = sums[0] / n_elems
    grad_loss = sums[1] / n_elems
    rel_loss = sums[2] / n_elems
    total = alpha * l1_loss + beta * grad_loss + gamma * rel_loss
    return total, l1_loss, grad_loss, rel_loss


def temperature_aware_loss(pred, target, alpha=1.0, beta=0.1, gamma=0.05):
    """Matches TemperatureAwareLoss.forward: returns (total_loss, dict_of_floats).

    Note: the float() casts below mirror torch's `.item()` and force a device
    sync; training loops that don't need host floats should call
    `_loss_components` directly and keep everything on device.
    """
    total, l1, grad, rel = _loss_components(pred, target, alpha=alpha, beta=beta, gamma=gamma)
    jax.block_until_ready(total)
    return total, {
        "l1_loss": float(l1),
        "grad_loss": float(grad),
        "rel_loss": float(rel),
        "total_loss": float(total),
    }


def _reference(pred, target, alpha=1.0, beta=0.1, gamma=0.05):
    """Pure-JAX reference for validation."""
    p = pred.astype(jnp.float32)[:, 0]
    t = target.astype(jnp.float32)[:, 0]
    l1 = jnp.mean(jnp.abs(p - t))

    sobel_x = jnp.array([[-1, 0, 1], [-2, 0, 2], [-1, 0, 1]], jnp.float32)
    sobel_y = jnp.array([[-1, -2, -1], [0, 0, 0], [1, 2, 1]], jnp.float32)

    def conv(x, w):
        return jax.lax.conv_general_dilated(
            x[:, None], w[None, None], (1, 1), ((1, 1), (1, 1)),
            dimension_numbers=("NCHW", "OIHW", "NCHW"))[:, 0]

    pg = jnp.sqrt(conv(p, sobel_x) ** 2 + conv(p, sobel_y) ** 2 + 1e-8)
    tg = jnp.sqrt(conv(t, sobel_x) ** 2 + conv(t, sobel_y) ** 2 + 1e-8)
    grad = jnp.mean(jnp.abs(pg - tg))
    rel = jnp.mean(jnp.abs(p - t) / (t + 1e-3))
    return alpha * l1 + beta * grad + gamma * rel


if __name__ == "__main__":
    key = jax.random.PRNGKey(0)
    k1, k2 = jax.random.split(key)
    N, C, H, W = 2, 1, 16, 16
    # temperature-like maps (positive), pred = target + noise
    target = 300.0 + 10.0 * jax.random.normal(k1, (N, C, H, W), jnp.float32)
    pred = target + 0.5 * jax.random.normal(k2, (N, C, H, W), jnp.float32)

    total, stats = temperature_aware_loss(pred, target)
    jax.block_until_ready(total)

    ref_total = _reference(pred, target)
    assert jnp.allclose(total, ref_total, rtol=1e-4, atol=1e-5), (total, ref_total)
    assert set(stats) == {"l1_loss", "grad_loss", "rel_loss", "total_loss"}

    print("KERNEL_OK")
</pallas_src>

<mosaic_0001>
module attributes {stable_mosaic.version = 11 : i64} {
  func.func @kernel(%arg0: i32, %arg1: i32, %arg2: memref<1x16x16xf32, #tpu.memory_space<vmem>>, %arg3: memref<1x16x16xf32, #tpu.memory_space<vmem>>, %arg4: memref<1x8x128xf32, #tpu.memory_space<vmem>>, %arg5: memref<1x18x18xf32, #tpu.memory_space<vmem>>, %arg6: memref<1x18x18xf32, #tpu.memory_space<vmem>>) attributes {dimension_semantics = [#tpu.dimension_semantics<parallel>, #tpu.dimension_semantics<arbitrary>], iteration_bounds = array<i64: 2, 1>, scalar_prefetch = 0 : i64, scratch_operands = 2 : i64, tpu.core_type = #tpu.core_type<tc>, window_params = [{transform_indices = @transform_0, window_bounds = array<i64: 1, 16, 16>}, {transform_indices = @transform_1, window_bounds = array<i64: 1, 16, 16>}, {transform_indices = @transform_2, window_bounds = array<i64: 1, 8, 128>}]} {
    %c0_i32 = arith.constant 0 : i32
    %0 = arith.cmpi eq, %arg1, %c0_i32 : i32
    %1 = arith.extui %0 : i1 to i32
    %c0_i32_0 = arith.constant 0 : i32
    %2 = arith.cmpi ne, %1, %c0_i32_0 : i32
    scf.if %2 {
      %cst_45 = arith.constant 0.000000e+00 : f32
      %137 = vector.broadcast %cst_45 : f32 to vector<1x8x128xf32>
      %c0_46 = arith.constant 0 : index
      %c0_47 = arith.constant 0 : index
      %c0_48 = arith.constant 0 : index
      %138 = vector.load %arg4[%c0_46, %c0_47, %c0_48] : memref<1x8x128xf32, #tpu.memory_space<vmem>>, vector<1x8x128xf32>
      tpu.vector_store %arg4[%c0_46, %c0_47, %c0_48], %137 {strides = array<i32>} : memref<1x8x128xf32, #tpu.memory_space<vmem>>, vector<1x8x128xf32>,
      %cst_49 = arith.constant 0.000000e+00 : f32
      %139 = vector.broadcast %cst_49 : f32 to vector<1x18x18xf32>
      %c0_50 = arith.constant 0 : index
      %c0_51 = arith.constant 0 : index
      %c0_52 = arith.constant 0 : index
      %140 = vector.load %arg5[%c0_50, %c0_51, %c0_52] : memref<1x18x18xf32, #tpu.memory_space<vmem>>, vector<1x18x18xf32>
      tpu.vector_store %arg5[%c0_50, %c0_51, %c0_52], %139 {strides = array<i32>} : memref<1x18x18xf32, #tpu.memory_space<vmem>>, vector<1x18x18xf32>,
      %cst_53 = arith.constant 0.000000e+00 : f32
      %141 = vector.broadcast %cst_53 : f32 to vector<1x18x18xf32>
      %c0_54 = arith.constant 0 : index
      %c0_55 = arith.constant 0 : index
      %c0_56 = arith.constant 0 : index
      %142 = vector.load %arg6[%c0_54, %c0_55, %c0_56] : memref<1x18x18xf32, #tpu.memory_space<vmem>>, vector<1x18x18xf32>
      tpu.vector_store %arg6[%c0_54, %c0_55, %c0_56], %141 {strides = array<i32>} : memref<1x18x18xf32, #tpu.memory_space<vmem>>, vector<1x18x18xf32>,
    } else {
    }
    %c0 = arith.constant 0 : index
    %c0_1 = arith.constant 0 : index
    %c0_2 = arith.constant 0 : index
    %3 = vector.load %arg2[%c0, %c0_1, %c0_2] : memref<1x16x16xf32, #tpu.memory_space<vmem>>, vector<1x16x16xf32>
    %c0_3 = arith.constant 0 : index
    %c0_4 = arith.constant 0 : index
    %c0_5 = arith.constant 0 : index
    %4 = vector.load %arg3[%c0_3, %c0_4, %c0_5] : memref<1x16x16xf32, #tpu.memory_space<vmem>>, vector<1x16x16xf32>
    %c0_6 = arith.constant 0 : index
    %c1 = arith.constant 1 : index
    %c1_7 = arith.constant 1 : index
    %5 = vector.load %arg5[%c0_6, %c1, %c1_7] : memref<1x18x18xf32, #tpu.memory_space<vmem>>, vector<1x16x16xf32>
    tpu.vector_store %arg5[%c0_6, %c1, %c1_7], %3 {strides = array<i32>} : memref<1x18x18xf32, #tpu.memory_space<vmem>>, vector<1x16x16xf32>,
    %c0_8 = arith.constant 0 : index
    %c1_9 = arith.constant 1 : index
    %c1_10 = arith.constant 1 : index
    %6 = vector.load %arg6[%c0_8, %c1_9, %c1_10] : memref<1x18x18xf32, #tpu.memory_space<vmem>>, vector<1x16x16xf32>
    tpu.vector_store %arg6[%c0_8, %c1_9, %c1_10], %4 {strides = array<i32>} : memref<1x18x18xf32, #tpu.memory_space<vmem>>, vector<1x16x16xf32>,
    %7 = arith.subf %3, %4 : vector<1x16x16xf32>
    %8 = math.absf %7 : vector<1x16x16xf32>
    %cst = arith.constant 1.000000e-03 : f32
    %9 = vector.broadcast %cst : f32 to vector<1x16x16xf32>
    %10 = arith.addf %4, %9 : vector<1x16x16xf32>
    %11 = tpu.reciprocal %10 {approx = true} : vector<1x16x16xf32> -> vector<1x16x16xf32>
    %12 = arith.mulf %8, %11 : vector<1x16x16xf32>
    %c0_11 = arith.constant 0 : index
    %c0_12 = arith.constant 0 : index
    %c0_13 = arith.constant 0 : index
    %13 = vector.load %arg5[%c0_11, %c0_12, %c0_13] : memref<1x18x18xf32, #tpu.memory_space<vmem>>, vector<1x18x18xf32>
    %14 = vector.extract_strided_slice %13 {offsets = [0, 0, 0], sizes = [1, 16, 16], strides = [1, 1, 1]} : vector<1x18x18xf32> to vector<1x16x16xf32>
    %cst_14 = arith.constant 0.000000e+00 : f32
    %15 = vector.broadcast %cst_14 : f32 to vector<1x16x16xf32>
    %16 = arith.subf %15, %14 : vector<1x16x16xf32>
    %17 = vector.extract_strided_slice %13 {offsets = [0, 0, 2], sizes = [1, 16, 16], strides = [1, 1, 1]} : vector<1x18x18xf32> to vector<1x16x16xf32>
    %18 = arith.addf %16, %17 : vector<1x16x16xf32>
    %19 = vector.extract_strided_slice %13 {offsets = [0, 1, 0], sizes = [1, 16, 16], strides = [1, 1, 1]} : vector<1x18x18xf32> to vector<1x16x16xf32>
    %cst_15 = arith.constant 2.000000e+00 : f32
    %20 = vector.broadcast %cst_15 : f32 to vector<1x16x16xf32>
    %21 = arith.mulf %20, %19 : vector<1x16x16xf32>
    %22 = arith.subf %18, %21 : vector<1x16x16xf32>
    %23 = vector.extract_strided_slice %13 {offsets = [0, 1, 2], sizes = [1, 16, 16], strides = [1, 1, 1]} : vector<1x18x18xf32> to vector<1x16x16xf32>
    %cst_16 = arith.constant 2.000000e+00 : f32
    %24 = vector.broadcast %cst_16 : f32 to vector<1x16x16xf32>
    %25 = arith.mulf %24, %23 : vector<1x16x16xf32>
    %26 = arith.addf %22, %25 : vector<1x16x16xf32>
    %27 = vector.extract_strided_slice %13 {offsets = [0, 2, 0], sizes = [1, 16, 16], strides = [1, 1, 1]} : vector<1x18x18xf32> to vector<1x16x16xf32>
    %28 = arith.subf %26, %27 : vector<1x16x16xf32>
    %29 = vector.extract_strided_slice %13 {offsets = [0, 2, 2], sizes = [1, 16, 16], strides = [1, 1, 1]} : vector<1x18x18xf32> to vector<1x16x16xf32>
    %30 = arith.addf %28, %29 : vector<1x16x16xf32>
    %31 = vector.extract_strided_slice %13 {offsets = [0, 0, 0], sizes = [1, 16, 16], strides = [1, 1, 1]} : vector<1x18x18xf32> to vector<1x16x16xf32>
    %cst_17 = arith.constant 0.000000e+00 : f32
    %32 = vector.broadcast %cst_17 : f32 to vector<1x16x16xf32>
    %33 = arith.subf %32, %31 : vector<1x16x16xf32>
    %34 = vector.extract_strided_slice %13 {offsets = [0, 0, 1], sizes = [1, 16, 16], strides = [1, 1, 1]} : vector<1x18x18xf32> to vector<1x16x16xf32>
    %cst_18 = arith.constant 2.000000e+00 : f32
    %35 = vector.broadcast %cst_18 : f32 to vector<1x16x16xf32>
    %36 = arith.mulf %35, %34 : vector<1x16x16xf32>
    %37 = arith.subf %33, %36 : vector<1x16x16xf32>
    %38 = vector.extract_strided_slice %13 {offsets = [0, 0, 2], sizes = [1, 16, 16], strides = [1, 1, 1]} : vector<1x18x18xf32> to vector<1x16x16xf32>
    %39 = arith.subf %37, %38 : vector<1x16x16xf32>
    %40 = vector.extract_strided_slice %13 {offsets = [0, 2, 0], sizes = [1, 16, 16], strides = [1, 1, 1]} : vector<1x18x18xf32> to vector<1x16x16xf32>
    %41 = arith.addf %39, %40 : vector<1x16x16xf32>
    %42 = vector.extract_strided_slice %13 {offsets = [0, 2, 1], sizes = [1, 16, 16], strides = [1, 1, 1]} : vector<1x18x18xf32> to vector<1x16x16xf32>
    %cst_19 = arith.constant 2.000000e+00 : f32
    %43 = vector.broadcast %cst_19 : f32 to vector<1x16x16xf32>
    %44 = arith.mulf %43, %42 : vector<1x16x16xf32>
    %45 = arith.addf %41, %44 : vector<1x16x16xf32>
    %46 = vector.extract_strided_slice %13 {offsets = [0, 2, 2], sizes = [1, 16, 16], strides = [1, 1, 1]} : vector<1x18x18xf32> to vector<1x16x16xf32>
    %47 = arith.addf %45, %46 : vector<1x16x16xf32>
    %48 = arith.mulf %30, %30 : vector<1x16x16xf32>
    %49 = arith.mulf %47, %47 : vector<1x16x16xf32>
    %50 = arith.addf %48, %49 : vector<1x16x16xf32>
    %cst_20 = arith.constant 9.99999993E-9 : f32
    %51 = vector.broadcast %cst_20 : f32 to vector<1x16x16xf32>
    %52 = arith.addf %50, %51 : vector<1x16x16xf32>
    %53 = math.sqrt %52 : vector<1x16x16xf32>
    %c0_21 = arith.constant 0 : index
    %c0_22 = arith.constant 0 : index
    %c0_23 = arith.constant 0 : index
    %54 = vector.load %arg6[%c0_21, %c0_22, %c0_23] : memref<1x18x18xf32, #tpu.memory_space<vmem>>, vector<1x18x18xf32>
    %55 = vector.extract_strided_slice %54 {offsets = [0, 0, 0], sizes = [1, 16, 16], strides = [1, 1, 1]} : vector<1x18x18xf32> to vector<1x16x16xf32>
    %cst_24 = arith.constant 0.000000e+00 : f32
    %56 = vector.broadcast %cst_24 : f32 to vector<1x16x16xf32>
    %57 = arith.subf %56, %55 : vector<1x16x16xf32>
    %58 = vector.extract_strided_slice %54 {offsets = [0, 0, 2], sizes = [1, 16, 16], strides = [1, 1, 1]} : vector<1x18x18xf32> to vector<1x16x16xf32>
    %59 = arith.addf %57, %58 : vector<1x16x16xf32>
    %60 = vector.extract_strided_slice %54 {offsets = [0, 1, 0], sizes = [1, 16, 16], strides = [1, 1, 1]} : vector<1x18x18xf32> to vector<1x16x16xf32>
    %cst_25 = arith.constant 2.000000e+00 : f32
    %61 = vector.broadcast %cst_25 : f32 to vector<1x16x16xf32>
    %62 = arith.mulf %61, %60 : vector<1x16x16xf32>
    %63 = arith.subf %59, %62 : vector<1x16x16xf32>
    %64 = vector.extract_strided_slice %54 {offsets = [0, 1, 2], sizes = [1, 16, 16], strides = [1, 1, 1]} : vector<1x18x18xf32> to vector<1x16x16xf32>
    %cst_26 = arith.constant 2.000000e+00 : f32
    %65 = vector.broadcast %cst_26 : f32 to vector<1x16x16xf32>
    %66 = arith.mulf %65, %64 : vector<1x16x16xf32>
    %67 = arith.addf %63, %66 : vector<1x16x16xf32>
    %68 = vector.extract_strided_slice %54 {offsets = [0, 2, 0], sizes = [1, 16, 16], strides = [1, 1, 1]} : vector<1x18x18xf32> to vector<1x16x16xf32>
    %69 = arith.subf %67, %68 : vector<1x16x16xf32>
    %70 = vector.extract_strided_slice %54 {offsets = [0, 2, 2], sizes = [1, 16, 16], strides = [1, 1, 1]} : vector<1x18x18xf32> to vector<1x16x16xf32>
    %71 = arith.addf %69, %70 : vector<1x16x16xf32>
    %72 = vector.extract_strided_slice %54 {offsets = [0, 0, 0], sizes = [1, 16, 16], strides = [1, 1, 1]} : vector<1x18x18xf32> to vector<1x16x16xf32>
    %cst_27 = arith.constant 0.000000e+00 : f32
    %73 = vector.broadcast %cst_27 : f32 to vector<1x16x16xf32>
    %74 = arith.subf %73, %72 : vector<1x16x16xf32>
    %75 = vector.extract_strided_slice %54 {offsets = [0, 0, 1], sizes = [1, 16, 16], strides = [1, 1, 1]} : vector<1x18x18xf32> to vector<1x16x16xf32>
    %cst_28 = arith.constant 2.000000e+00 : f32
    %76 = vector.broadcast %cst_28 : f32 to vector<1x16x16xf32>
    %77 = arith.mulf %76, %75 : vector<1x16x16xf32>
    %78 = arith.subf %74, %77 : vector<1x16x16xf32>
    %79 = vector.extract_strided_slice %54 {offsets = [0, 0, 2], sizes = [1, 16, 16], strides = [1, 1, 1]} : vector<1x18x18xf32> to vector<1x16x16xf32>
    %80 = arith.subf %78, %79 : vector<1x16x16xf32>
    %81 = vector.extract_strided_slice %54 {offsets = [0, 2, 0], sizes = [1, 16, 16], strides = [1, 1, 1]} : vector<1x18x18xf32> to vector<1x16x16xf32>
    %82 = arith.addf %80, %81 : vector<1x16x16xf32>
    %83 = vector.extract_strided_slice %54 {offsets = [0, 2, 1], sizes = [1, 16, 16], strides = [1, 1, 1]} : vector<1x18x18xf32> to vector<1x16x16xf32>
    %cst_29 = arith.constant 2.000000e+00 : f32
    %84 = vector.broadcast %cst_29 : f32 to vector<1x16x16xf32>
    %85 = arith.mulf %84, %83 : vector<1x16x16xf32>
    %86 = arith.addf %82, %85 : vector<1x16x16xf32>
    %87 = vector.extract_strided_slice %54 {offsets = [0, 2, 2], sizes = [1, 16, 16], strides = [1, 1, 1]} : vector<1x18x18xf32> to vector<1x16x16xf32>
    %88 = arith.addf %86, %87 : vector<1x16x16xf32>
    %89 = arith.mulf %71, %71 : vector<1x16x16xf32>
    %90 = arith.mulf %88, %88 : vector<1x16x16xf32>
    %91 = arith.addf %89, %90 : vector<1x16x16xf32>
    %cst_30 = arith.constant 9.99999993E-9 : f32
    %92 = vector.broadcast %cst_30 : f32 to vector<1x16x16xf32>
    %93 = arith.addf %91, %92 : vector<1x16x16xf32>
    %94 = math.sqrt %93 : vector<1x16x16xf32>
    %95 = arith.subf %53, %94 : vector<1x16x16xf32>
    %96 = math.absf %95 : vector<1x16x16xf32>
    %97 = vector.shape_cast %8 : vector<1x16x16xf32> to vector<1x1x16x16xf32>
    %cst_31 = arith.constant dense<0.000000e+00> : vector<1xf32>
    %98 = vector.multi_reduction <add>, %97, %cst_31 [1, 2, 3] : vector<1x1x16x16xf32> to vector<1xf32>
    %99 = vector.shape_cast %98 : vector<1xf32> to vector<1x1x1x1xf32>
    %100 = vector.extract %99[0, 0, 0, 0] : f32 from vector<1x1x1x1xf32>
    %101 = vector.shape_cast %96 : vector<1x16x16xf32> to vector<1x1x16x16xf32>
    %cst_32 = arith.constant dense<0.000000e+00> : vector<1xf32>
    %102 = vector.multi_reduction <add>, %101, %cst_32 [1, 2, 3] : vector<1x1x16x16xf32> to vector<1xf32>
    %103 = vector.shape_cast %102 : vector<1xf32> to vector<1x1x1x1xf32>
    %104 = vector.extract %103[0, 0, 0, 0] : f32 from vector<1x1x1x1xf32>
    %105 = vector.shape_cast %12 : vector<1x16x16xf32> to vector<1x1x16x16xf32>
    %cst_33 = arith.constant dense<0.000000e+00> : vector<1xf32>
    %106 = vector.multi_reduction <add>, %105, %cst_33 [1, 2, 3] : vector<1x1x16x16xf32> to vector<1xf32>
    %107 = vector.shape_cast %106 : vector<1xf32> to vector<1x1x1x1xf32>
    %108 = vector.extract %107[0, 0, 0, 0] : f32 from vector<1x1x1x1xf32>
    %109 = tpu.iota {dimensions = array<i32: 1>} : vector<8x128xi32>
    %110 = tpu.iota {dimensions = array<i32: 0>} : vector<8x128xi32>
    %c0_i32_34 = arith.constant 0 : i32
    %111 = vector.broadcast %c0_i32_34 : i32 to vector<8x128xi32>
    %112 = arith.cmpi eq, %110, %111 : vector<8x128xi32>
    %c0_i32_35 = arith.constant 0 : i32
    %113 = vector.broadcast %c0_i32_35 : i32 to vector<8x128xi32>
    %114 = arith.cmpi eq, %109, %113 : vector<8x128xi32>
    %115 = arith.andi %112, %114 : vector<8x128xi1>
    %cst_36 = arith.constant 0.000000e+00 : f32
    %116 = vector.broadcast %100 : f32 to vector<8x128xf32>
    %117 = vector.broadcast %cst_36 : f32 to vector<8x128xf32>
    %118 = arith.select %115, %116, %117 : vector<8x128xi1>, vector<8x128xf32>
    %c1_i32 = arith.constant 1 : i32
    %119 = vector.broadcast %c1_i32 : i32 to vector<8x128xi32>
    %120 = arith.cmpi eq, %109, %119 : vector<8x128xi32>
    %121 = arith.andi %112, %120 : vector<8x128xi1>
    %cst_37 = arith.constant 0.000000e+00 : f32
    %122 = vector.broadcast %104 : f32 to vector<8x128xf32>
    %123 = vector.broadcast %cst_37 : f32 to vector<8x128xf32>
    %124 = arith.select %121, %122, %123 : vector<8x128xi1>, vector<8x128xf32>
    %125 = arith.addf %118, %124 : vector<8x128xf32>
    %c2_i32 = arith.constant 2 : i32
    %126 = vector.broadcast %c2_i32 : i32 to vector<8x128xi32>
    %127 = arith.cmpi eq, %109, %126 : vector<8x128xi32>
    %128 = arith.andi %112, %127 : vector<8x128xi1>
    %cst_38 = arith.constant 0.000000e+00 : f32
    %129 = vector.broadcast %108 : f32 to vector<8x128xf32>
    %130 = vector.broadcast %cst_38 : f32 to vector<8x128xf32>
    %131 = arith.select %128, %129, %130 : vector<8x128xi1>, vector<8x128xf32>
    %132 = arith.addf %125, %131 : vector<8x128xf32>
    %c0_39 = arith.constant 0 : index
    %c0_40 = arith.constant 0 : index
    %c0_41 = arith.constant 0 : index
    %133 = vector.load %arg4[%c0_39, %c0_40, %c0_41] : memref<1x8x128xf32, #tpu.memory_space<vmem>>, vector<1x8x128xf32>
    %134 = vector.shape_cast %132 : vector<8x128xf32> to vector<1x8x128xf32>
    %135 = arith.addf %133, %134 : vector<1x8x128xf32>
    %c0_42 = arith.constant 0 : index
    %c0_43 = arith.constant 0 : index
    %c0_44 = arith.constant 0 : index
    %136 = vector.load %arg4[%c0_42, %c0_43, %c0_44] : memref<1x8x128xf32, #tpu.memory_space<vmem>>, vector<1x8x128xf32>
    tpu.vector_store %arg4[%c0_42, %c0_43, %c0_44], %135 {strides = array<i32>} : memref<1x8x128xf32, #tpu.memory_space<vmem>>, vector<1x8x128xf32>,
    return
  }
  func.func @transform_0(%arg0: i32, %arg1: i32) -> (i32, i32, i32) {
    %c1_i32 = arith.constant 1 : i32
    %0 = arith.muli %arg0, %c1_i32 : i32
    %1 = arith.addi %0, %arg1 : i32
    %c0_i32 = arith.constant 0 : i32
    %c0_i32_0 = arith.constant 0 : i32
    %c0_i32_1 = arith.constant 0 : i32
    return %1, %c0_i32, %c0_i32_0 : i32, i32, i32
  }
  func.func @transform_1(%arg0: i32, %arg1: i32) -> (i32, i32, i32) {
    %c1_i32 = arith.constant 1 : i32
    %0 = arith.muli %arg0, %c1_i32 : i32
    %1 = arith.addi %0, %arg1 : i32
    %c0_i32 = arith.constant 0 : i32
    %c0_i32_0 = arith.constant 0 : i32
    %c0_i32_1 = arith.constant 0 : i32
    return %1, %c0_i32, %c0_i32_0 : i32, i32, i32
  }
  func.func @transform_2(%arg0: i32, %arg1: i32) -> (i32, i32, i32) {
    %c0_i32 = arith.constant 0 : i32
    %c0_i32_0 = arith.constant 0 : i32
    %c0_i32_1 = arith.constant 0 : i32
    return %arg0, %c0_i32, %c0_i32_0 : i32, i32, i32
  }
}

</mosaic_0001>

<llo_original>
// kernel: _loss_components.1
$region0: #{_loss_components.1}
  #allocation0 [shape = 'u32[]', space=smem, size = 0x4, offset = 0x4, fixed_abs, tag = 'smem constant byte address 0x4 - core index']
  #allocation1 [shape = 'u32[144,128]{1,0:T(1,128)}', space=vmem, size = 0x12000, scoped, tag = 'internal scratch']
  #allocation2 [shape = 'f32[1,18,18]{2,1,0:T(8,128)}', space=vmem, size = 0x3000, scoped, tag = 'scratch operand']
  #allocation3 [shape = 'f32[1,18,18]{2,1,0:T(8,128)}', space=vmem, size = 0x3000, scoped, tag = 'scratch operand']
  %s0 = inlined_call_operand.hbm [shape: f32[2,16,16], index: 0, kind: input, shape index: {}]
  %s1 = inlined_call_operand.hbm [shape: f32[2,16,16], index: 1, kind: input, shape index: {}]
  %s2 = inlined_call_operand.vmem [shape: f32[2,8,128], index: 2, kind: output, shape index: {}]
  %s3 = sld [smem:[#allocation0]]
  $region53: #{_loss_components.1} parent=0
    _
  %s5 = ssub.s32 1, %s3
  %s6 = scalar_select 0, %s5, %s3
  $region1: #{_loss_components.1} parent=0
    #allocation4 [shape = 'u8[16384]{0}', space=vmem, size = 0x4000, scoped, tag = 'input window, operand 0']
    #allocation5 [shape = 's32[2]{0}', space=sflag, size = 0x8, scoped, tag = 'scoped memory for _loss_components.1']
    #allocation6 [shape = 'u8[16384]{0}', space=vmem, size = 0x4000, scoped, tag = 'input window, operand 1']
    #allocation7 [shape = 's32[2]{0}', space=sflag, size = 0x8, scoped, tag = 'scoped memory for _loss_components.1']
    %7 = vsyncpa [#allocation5], 0
    %s8 = scalar_lea.sflag [#allocation5], 1
    %9 = vsyncpa %s8, 0
    %10 = vsyncpa [#allocation7], 0
    %s11 = scalar_lea.sflag [#allocation7], 1
    %12 = vsyncpa %s11, 0
    loop: start=0, step=1, limit=4
    $region2: #{_loss_components.1} parent=1 // loop_pre_header
      _
    $region3: #{_loss_components.1} parent=1 // loop_header
      %s14 = sphi 0, %s18
      %p15 = scmp.ge.s32.totalorder %s14, 4
      %s21 = sphi 0, %s33
      %s22 = sphi 0, %s29
      %s23 = sphi 0, %s21
      %s24 = sphi 0, %s22
      %s25 = sphi 0, %s23
      %s26 = sphi 0, %s24
      %s38 = sphi 0, %s40
      %s41 = sphi 0, %s38
      %s42 = sphi 0, %s41
      %s58 = sphi 0, %s42
      %s66 = sphi 0, %s68
      %s69 = sphi 0, %s66
      %s70 = sphi 0, %s69
      %s86 = sphi 0, %s70
      %s92 = sphi 0, %s94
      %s95 = sphi 0, %s92
      %s96 = sphi 0, %s95
      %s112 = sphi 0, %s96
    $region4: #{_loss_components.1} parent=1 // loop_header_branch
      %17 = sbr.rel (%p15) target = $region8
    $region5: #{_loss_components.1} parent=1 // loop_body
      %s19 = ssub.s32 %s14, 1
      %s20 = ssub.s32 %s14, 2
      %s27 = sadd.s32 1, %s22
      %p28 = scmp.ge.s32.totalorder %s27, 1
      %s29 = scalar_select %p28, 0, %s27
      %s30 = sadd.s32 1, %s21
      %s31 = scalar_select %p28, %s30, %s21
      %p32 = scmp.ge.s32.totalorder %s31, 2
      %s33 = scalar_select %p32, 0, %s31
      %s34 = sadd.s32 %s21, %s22
      %s35 = sadd.s32 %s33, %s29
      %s36 = ssub.s32 %s34, %s35
      %p37 = scmp.eq.s32.totalorder %s36, 0
      %s39 = sadd.s32 %s38, 1
      %s40 = scalar_select %p37, %s38, %s39
      %p43 = pneg %p37
      %p44 = scmp.eq.s32.totalorder %s14, 1
      %p45 = por %p43, %p44
      %p46 = scmp.ne.s32.totalorder %s38, %s41
      %p47 = scmp.eq.s32.totalorder %s14, 0
      %p48 = por %p46, %p47
      %p49 = scmp.ne.s32.totalorder %s38, %s41
      %p50 = scmp.eq.s32.totalorder %s19, 1
      %p51 = por %p49, %p50
      %p52 = scmp.ne.s32.totalorder %s41, %s42
      %p53 = scmp.eq.s32.totalorder %s19, 0
      %p54 = por %p52, %p53
      %p55 = scmp.ne.s32.totalorder %s41, %s42
      %p56 = scmp.eq.s32.totalorder %s20, 1
      %p57 = por %p55, %p56
      %p59 = scmp.ne.s32.totalorder %s42, %s58
      %p60 = scmp.eq.s32.totalorder %s20, 0
      %p61 = por %p59, %p60
      %s62 = sadd.s32 %s21, %s22
      %s63 = sadd.s32 %s33, %s29
      %s64 = ssub.s32 %s62, %s63
      %p65 = scmp.eq.s32.totalorder %s64, 0
      %s67 = sadd.s32 %s66, 1
      %s68 = scalar_select %p65, %s66, %s67
      %p71 = pneg %p65
      %p72 = scmp.eq.s32.totalorder %s14, 1
      %p73 = por %p71, %p72
      %p74 = scmp.ne.s32.totalorder %s66, %s69
      %p75 = scmp.eq.s32.totalorder %s14, 0
      %p76 = por %p74, %p75
      %p77 = scmp.ne.s32.totalorder %s66, %s69
      %p78 = scmp.eq.s32.totalorder %s19, 1
      %p79 = por %p77, %p78
      %p80 = scmp.ne.s32.totalorder %s69, %s70
      %p81 = scmp.eq.s32.totalorder %s19, 0
      %p82 = por %p80, %p81
      %p83 = scmp.ne.s32.totalorder %s69, %s70
      %p84 = scmp.eq.s32.totalorder %s20, 1
      %p85 = por %p83, %p84
      %p87 = scmp.ne.s32.totalorder %s70, %s86
      %p88 = scmp.eq.s32.totalorder %s20, 0
      %p89 = por %p87, %p88
      %s90 = ssub.s32 %s21, %s33
      %p91 = scmp.eq.s32.totalorder %s90, 0
      %s93 = sadd.s32 %s92, 1
      %s94 = scalar_select %p91, %s92, %s93
      %p97 = pneg %p91
      %p98 = scmp.eq.s32.totalorder %s14, 1
      %p99 = por %p97, %p98
      %p100 = scmp.ne.s32.totalorder %s92, %s95
      %p101 = scmp.eq.s32.totalorder %s14, 0
      %p102 = por %p100, %p101
      %p103 = scmp.ne.s32.totalorder %s92, %s95
      %p104 = scmp.eq.s32.totalorder %s19, 1
      %p105 = por %p103, %p104
      %p106 = scmp.ne.s32.totalorder %s95, %s96
      %p107 = scmp.eq.s32.totalorder %s19, 0
      %p108 = por %p106, %p107
      %p109 = scmp.ne.s32.totalorder %s95, %s96
      %p110 = scmp.eq.s32.totalorder %s20, 1
      %p111 = por %p109, %p110
      %p113 = scmp.ne.s32.totalorder %s96, %s112
      %p114 = scmp.eq.s32.totalorder %s20, 0
      %p115 = por %p113, %p114
      %p116 = scmp.le.s32.totalorder 1, %s14
      %p117 = scmp.lt.s32.totalorder %s14, 3
      %p118 = pnand %p116, %p117
      %p119 = pneg %p118
      // Predicated region
      $region9: #{_loss_components.1} parent=5 // pred_check
        _
      $region10: #{_loss_components.1} parent=5 // pred_check_branch
        %121 = sbr.rel (%p118) target = $region12
      $region11: #{_loss_components.1} parent=5 // pred_region
        %s122 = ssub.s32 %s14, 1
      $region12: #{_loss_components.1} parent=5 // pred_fallthru
        _
      %p123 = scmp.lt.s32.totalorder %s14, 2
      // Predicated region
      $region13: #{_loss_components.1} parent=5 // pred_check
        %p124 = pneg %p123
      $region14: #{_loss_components.1} parent=5 // pred_check_branch
        %126 = sbr.rel (%p124) target = $region16
      $region15: #{_loss_components.1} parent=5 // pred_region
        // Predicated region
        $region17: #{_loss_components.1} parent=15 // pred_check
          %p127 = pneg %p48
        $region18: #{_loss_components.1} parent=15 // pred_check_branch
          %129 = sbr.rel (%p127) target = $region20
        $region19: #{_loss_components.1} parent=15 // pred_region
          %s130 = sand.u32 %s38, 1
          %s131 = scalar_lea.sflag [#allocation5], %s130
          %s132 = sand.u32 %s38, 1
          %s133 = smul.addr %s132, 16
          %s134 = scalar_lea.vmem [#allocation4], %s133
          %s135 = sadd.s32 %s21, %s22
          %s137 = ssub.s32 256, 256
          %138 = vsyncadd %s131, %s137
          %s139 = smul.addr %s135, 2
          %s140 = smul.addr %s139, 128
          %s141 = scalar_lea.hbm %s0, %s140
          %s142 = sshll.u32 %s134, 4
          %s143 = int_to_ptr.vmem [resolvable:$true] %s142
          %148 = dma.hbm_to_vmem [thread:$0]  %s141, 256, %s143, %s131, 128, 128, 8
        $region20: #{_loss_components.1} parent=15 // pred_fallthru
          _
        // Predicated region
        $region21: #{_loss_components.1} parent=15 // pred_check
          %p149 = pneg %p76
        $region22: #{_loss_components.1} parent=15 // pred_check_branch
          %151 = sbr.rel (%p149) target = $region24
        $region23: #{_loss_components.1} parent=15 // pred_region
          %s152 = sand.u32 %s66, 1
          %s153 = scalar_lea.sflag [#allocation7], %s152
          %s154 = sand.u32 %s66, 1
          %s155 = smul.addr %s154, 16
          %s156 = scalar_lea.vmem [#allocation6], %s155
          %s157 = sadd.s32 %s21, %s22
          %s159 = ssub.s32 256, 256
          %160 = vsyncadd %s153, %s159
          %s161 = smul.addr %s157, 2
          %s162 = smul.addr %s161, 128
          %s163 = scalar_lea.hbm %s1, %s162
          %s164 = sshll.u32 %s156, 4
          %s165 = int_to_ptr.vmem [resolvable:$true] %s164
          %170 = dma.hbm_to_vmem [thread:$0]  %s163, 256, %s165, %s153, 128, 128, 8
        $region24: #{_loss_components.1} parent=15 // pred_fallthru
          _
      $region16: #{_loss_components.1} parent=5 // pred_fallthru
        _
      %p171 = scmp.le.s32.totalorder 1, %s14
      %p172 = scmp.lt.s32.totalorder %s14, 3
      %p173 = pnand %p171, %p172
      %p174 = pneg %p173
      // Predicated region
      $region25: #{_loss_components.1} parent=5 // pred_check
        _
      $region26: #{_loss_components.1} parent=5 // pred_check_branch
        %176 = sbr.rel (%p173) target = $region28
      $region27: #{_loss_components.1} parent=5 // pred_region
        %s177 = ssub.s32 %s14, 1
        %s178 = sand.u32 %s41, 1
        %s179 = scalar_lea.sflag [#allocation5], %s178
        %s180 = sand.u32 %s41, 1
        %s181 = smul.addr %s180, 16
        %s182 = scalar_lea.vmem [#allocation4], %s181
        // Predicated region
        $region29: #{_loss_components.1} parent=27 // pred_check
          %p183 = pneg %p54
        $region30: #{_loss_components.1} parent=27 // pred_check_branch
          %185 = sbr.rel (%p183) target = $region32
        $region31: #{_loss_components.1} parent=27 // pred_region
          %186 = dma.done %s179, 256
        $region32: #{_loss_components.1} parent=27 // pred_fallthru
          _
        %s187 = sand.u32 %s69, 1
        %s188 = scalar_lea.sflag [#allocation7], %s187
        %s189 = sand.u32 %s69, 1
        %s190 = smul.addr %s189, 16
        %s191 = scalar_lea.vmem [#allocation6], %s190
        // Predicated region
        $region33: #{_loss_components.1} parent=27 // pred_check
          %p192 = pneg %p82
        $region34: #{_loss_components.1} parent=27 // pred_check_branch
          %194 = sbr.rel (%p192) target = $region36
        $region35: #{_loss_components.1} parent=27 // pred_region
          %195 = dma.done %s188, 256
        $region36: #{_loss_components.1} parent=27 // pred_fallthru
          _
        %s196 = sand.u32 %s41, 1
        %s197 = scalar_lea.sflag [#allocation5], %s196
        %s198 = sand.u32 %s41, 1
        %s199 = smul.addr %s198, 16
        %s200 = scalar_lea.vmem [#allocation4], %s199
        %p201 = pneg %p54
        %p202 = pneg %p51
        %s203 = sand.u32 %s69, 1
        %s204 = scalar_lea.sflag [#allocation7], %s203
        %s205 = sand.u32 %s69, 1
        %s206 = smul.addr %s205, 16
        %s207 = scalar_lea.vmem [#allocation6], %s206
        %p208 = pneg %p82
        %p209 = pneg %p79
        %p210 = pneg %p108
        %p211 = pneg %p105
        %p212 = scmp.lt.s32.totalorder %s23, 1
        %s213 = scalar_select %p212, %s23, 1
        %s214 = smul.addr %s213, 8
        %s215 = scalar_lea.vmem %s2, %s214
        %s216 = sadd.s32 %s23, %s24
        %s217 = sadd.s32 %s23, %s24
        %p218 = scmp.lt.s32.totalorder %s23, 1
        %s219 = scalar_select %p218, %s23, 1
        %s220 = smul.addr %s219, 8
        %s221 = scalar_lea.vmem %s2, %s220
        %p222 = scmp.eq.s32.totalorder %s24, 0
        // Predicated region
        $region37: #{_loss_components.1} parent=27 // pred_check
          %p223 = pneg %p222
        $region38: #{_loss_components.1} parent=27 // pred_check_branch
          %225 = sbr.rel (%p223) target = $region40
        $region39: #{_loss_components.1} parent=27 // pred_region
          %226 = vst [vmem:[%s221] sm:$0xff] 0.0
          %vm227 = vcmask 146432
          %228 = vst.msk [vmem:[#allocation2] sm:$0xff] %vm227, 0.0
          %229 = vst.msk [vmem:[#allocation2 + $0x8] sm:$0xff] %vm227, 0.0
          %vm230 = vcmask 140288
          %231 = vst.msk [vmem:[#allocation2 + $0x10] sm:$0x3] %vm230, 0.0
          %232 = vst.msk [vmem:[#allocation3] sm:$0xff] %vm227, 0.0
          %233 = vst.msk [vmem:[#allocation3 + $0x8] sm:$0xff] %vm227, 0.0
          %234 = vst.msk [vmem:[#allocation3 + $0x10] sm:$0x3] %vm230, 0.0
        $region40: #{_loss_components.1} parent=27 // pred_fallthru
          _
        %v235 = vld [vmem:[%s182] sm:$0xff]
        %v236 = vld [vmem:[%s182 + $0x8] sm:$0xff]
        %v237 = vld [vmem:[%s191] sm:$0xff]
        %v238 = vld [vmem:[%s191 + $0x8] sm:$0xff]
        %241 = vrot.lane.b32.xlu0 %v235, 1
        %v242 = vpop.permute.xlu0 %241
        %243 = vrot.lane.b32.xlu0 %v236, 1
        %v244 = vpop.permute.xlu0 %243
        %vm247 = vcmask 138248
        %248 = vst.msk [vmem:[#allocation2 + $0x1] sm:$0xff] %vm247, %v242
        %249 = vst.msk [vmem:[#allocation2 + $0x9] sm:$0xff] %vm247, %v244
        %252 = vrot.lane.b32.xlu0 %v237, 1
        %v253 = vpop.permute.xlu0 %252
        %254 = vrot.lane.b32.xlu0 %v238, 1
        %v255 = vpop.permute.xlu0 %254
        %258 = vst.msk [vmem:[#allocation3 + $0x1] sm:$0xff] %vm247, %v253
        %259 = vst.msk [vmem:[#allocation3 + $0x9] sm:$0xff] %vm247, %v255
        %v260 = vsub.f32 %v235, %v237
        %v261 = vsub.f32 %v236, %v238
        %v262 = vand.u32 2147483647, %v260
        %v263 = vand.u32 2147483647, %v261
        %v264 = vadd.f32 %v237, 0.001
        %v265 = vadd.f32 %v238, 0.001
        %v266 = vrcp.pop %v264
        %v267 = vrcp.pop %v265
        %v268 = vmul.f32 %v262, %v266
        %v269 = vmul.f32 %v263, %v267
        %v270 = vld [vmem:[#allocation2] sm:$0xff]
        %v271 = vld [vmem:[#allocation2 + $0x8] sm:$0xff]
        %v272 = vld [vmem:[#allocation2 + $0x10] sm:$0x3]
        %v273 = vsub.f32 0.0, %v270
        %v274 = vsub.f32 0.0, %v271
        %277 = vrot.lane.b32.xlu0 %v270, 126
        %v278 = vpop.permute.xlu0 %277
        %279 = vrot.lane.b32.xlu0 %v271, 126
        %v280 = vpop.permute.xlu0 %279
        %v283 = vadd.f32 %v273, %v278
        %v284 = vadd.f32 %v274, %v280
        %v285 = vmul.f32 %v270, 2.0
        %v286 = vmul.f32 %v271, 2.0
        %v287 = vmul.f32 %v272, 2.0
        %vm291 = vcmask 1046528
        %v292 = vrot.slane %v285, 1
        %v293 = vrot.slane %v286, 1
        %v294 = vsel %vm291, %v292, %v293
        %v295 = vrot.slane %v287, 1
        %v296 = vsel %vm291, %v293, %v295
        %v299 = vsub.f32 %v283, %v294
        %v300 = vsub.f32 %v284, %v296
        %301 = vrot.lane.b32.xlu0 %v294, 126
        %v302 = vpop.permute.xlu0 %301
        %303 = vrot.lane.b32.xlu0 %v296, 126
        %v304 = vpop.permute.xlu0 %303
        %v307 = vadd.f32 %v299, %v302
        %v308 = vadd.f32 %v300, %v304
        %vm310 = vcmask 1045504
        %v311 = vrot.slane %v270, 2
        %v312 = vrot.slane %v271, 2
        %v313 = vsel %vm310, %v311, %v312
        %v314 = vrot.slane %v272, 2
        %v315 = vsel %vm310, %v312, %v314
        %v318 = vsub.f32 %v307, %v313
        %v319 = vsub.f32 %v308, %v315
        %320 = vrot.lane.b32.xlu0 %v313, 126
        %v321 = vpop.permute.xlu0 %320
        %322 = vrot.lane.b32.xlu0 %v315, 126
        %v323 = vpop.permute.xlu0 %322
        %v326 = vadd.f32 %v318, %v321
        %v327 = vadd.f32 %v319, %v323
        %328 = vrot.lane.b32.xlu0 %v285, 127
        %v329 = vpop.permute.xlu0 %328
        %330 = vrot.lane.b32.xlu0 %v286, 127
        %v331 = vpop.permute.xlu0 %330
        %v334 = vsub.f32 %v273, %v329
        %v335 = vsub.f32 %v274, %v331
        %v336 = vsub.f32 %v334, %v278
        %v337 = vsub.f32 %v335, %v280
        %v338 = vadd.f32 %v336, %v313
        %v339 = vadd.f32 %v337, %v315
        %v340 = vrot.slane %v285, 2
        %v341 = vrot.slane %v286, 2
        %v342 = vsel %vm310, %v340, %v341
        %v343 = vrot.slane %v287, 2
        %v344 = vsel %vm310, %v341, %v343
        %345 = vrot.lane.b32.xlu0 %v342, 127
        %v346 = vpop.permute.xlu0 %345
        %347 = vrot.lane.b32.xlu0 %v344, 127
        %v348 = vpop.permute.xlu0 %347
        %v351 = vadd.f32 %v338, %v346
        %v352 = vadd.f32 %v339, %v348
        %v353 = vadd.f32 %v351, %v321
        %v354 = vadd.f32 %v352, %v323
        %v355 = vmul.f32 %v326, %v326
        %v356 = vmul.f32 %v327, %v327
        %v357 = vmul.f32 %v353, %v353
        %v358 = vmul.f32 %v354, %v354
        %v359 = vadd.f32 %v355, %v357
        %v360 = vadd.f32 %v356, %v358
        %v361 = vadd.f32 %v359, 1e-08
        %v362 = vadd.f32 %v360, 1e-08
        %v363 = vrsqrt.pop %v361
        %v364 = vmul.f32 %v361, %v363
        %vm365 = vcmp.eq.f32.partialorder %v361, inf
        %v366 = vsel %vm365, %v361, %v364
        %vm367 = vcmp.eq.f32.partialorder %v361, 0.0
        %v368 = vand.u32 %v361, 2147483648
        %v369 = vsel %vm367, %v368, %v366
        %v370 = vrsqrt.pop %v362
        %v371 = vmul.f32 %v362, %v370
        %vm372 = vcmp.eq.f32.partialorder %v362, inf
        %v373 = vsel %vm372, %v362, %v371
        %vm374 = vcmp.eq.f32.partialorder %v362, 0.0
        %v375 = vand.u32 %v362, 2147483648
        %v376 = vsel %vm374, %v375, %v373
        %v377 = vld [vmem:[#allocation3] sm:$0xff]
        %v378 = vld [vmem:[#allocation3 + $0x8] sm:$0xff]
        %v379 = vld [vmem:[#allocation3 + $0x10] sm:$0x3]
        %v380 = vsub.f32 0.0, %v377
        %v381 = vsub.f32 0.0, %v378
        %384 = vrot.lane.b32.xlu0 %v377, 126
        %v385 = vpop.permute.xlu0 %384
        %386 = vrot.lane.b32.xlu0 %v378, 126
        %v387 = vpop.permute.xlu0 %386
        %v390 = vadd.f32 %v380, %v385
        %v391 = vadd.f32 %v381, %v387
        %v392 = vmul.f32 %v377, 2.0
        %v393 = vmul.f32 %v378, 2.0
        %v394 = vmul.f32 %v379, 2.0
        %v398 = vrot.slane %v392, 1
        %v399 = vrot.slane %v393, 1
        %v400 = vsel %vm291, %v398, %v399
        %v401 = vrot.slane %v394, 1
        %v402 = vsel %vm291, %v399, %v401
        %v405 = vsub.f32 %v390, %v400
        %v406 = vsub.f32 %v391, %v402
        %407 = vrot.lane.b32.xlu0 %v400, 126
        %v408 = vpop.permute.xlu0 %407
        %409 = vrot.lane.b32.xlu0 %v402, 126
        %v410 = vpop.permute.xlu0 %409
        %v413 = vadd.f32 %v405, %v408
        %v414 = vadd.f32 %v406, %v410
        %v416 = vrot.slane %v377, 2
        %v417 = vrot.slane %v378, 2
        %v418 = vsel %vm310, %v416, %v417
        %v419 = vrot.slane %v379, 2
        %v420 = vsel %vm310, %v417, %v419
        %v423 = vsub.f32 %v413, %v418
        %v424 = vsub.f32 %v414, %v420
        %425 = vrot.lane.b32.xlu0 %v418, 126
        %v426 = vpop.permute.xlu0 %425
        %427 = vrot.lane.b32.xlu0 %v420, 126
        %v428 = vpop.permute.xlu0 %427
        %v431 = vadd.f32 %v423, %v426
        %v432 = vadd.f32 %v424, %v428
        %433 = vrot.lane.b32.xlu0 %v392, 127
        %v434 = vpop.permute.xlu0 %433
        %435 = vrot.lane.b32.xlu0 %v393, 127
        %v436 = vpop.permute.xlu0 %435
        %v439 = vsub.f32 %v380, %v434
        %v440 = vsub.f32 %v381, %v436
        %v441 = vsub.f32 %v439, %v385
        %v442 = vsub.f32 %v440, %v387
        %v443 = vadd.f32 %v441, %v418
        %v444 = vadd.f32 %v442, %v420
        %v445 = vrot.slane %v392, 2
        %v446 = vrot.slane %v393, 2
        %v447 = vsel %vm310, %v445, %v446
        %v448 = vrot.slane %v394, 2
        %v449 = vsel %vm310, %v446, %v448
        %450 = vrot.lane.b32.xlu0 %v447, 127
        %v451 = vpop.permute.xlu0 %450
        %452 = vrot.lane.b32.xlu0 %v449, 127
        %v453 = vpop.permute.xlu0 %452
        %v456 = vadd.f32 %v443, %v451
        %v457 = vadd.f32 %v444, %v453
        %v458 = vadd.f32 %v456, %v426
        %v459 = vadd.f32 %v457, %v428
        %v460 = vmul.f32 %v431, %v431
        %v461 = vmul.f32 %v432, %v432
        %v462 = vmul.f32 %v458, %v458
        %v463 = vmul.f32 %v459, %v459
        %v464 = vadd.f32 %v460, %v462
        %v465 = vadd.f32 %v461, %v463
        %v466 = vadd.f32 %v464, 1e-08
        %v467 = vadd.f32 %v465, 1e-08
        %v468 = vrsqrt.pop %v466
        %v469 = vmul.f32 %v466, %v468
        %vm470 = vcmp.eq.f32.partialorder %v466, inf
        %v471 = vsel %vm470, %v466, %v469
        %vm472 = vcmp.eq.f32.partialorder %v466, 0.0
        %v473 = vand.u32 %v466, 2147483648
        %v474 = vsel %vm472, %v473, %v471
        %v475 = vrsqrt.pop %v467
        %v476 = vmul.f32 %v467, %v475
        %vm477 = vcmp.eq.f32.partialorder %v467, inf
        %v478 = vsel %vm477, %v467, %v476
        %vm479 = vcmp.eq.f32.partialorder %v467, 0.0
        %v480 = vand.u32 %v467, 2147483648
        %v481 = vsel %vm479, %v480, %v478
        %v482 = vsub.f32 %v369, %v474
        %v483 = vsub.f32 %v376, %v481
        %v484 = vand.u32 2147483647, %v482
        %v485 = vand.u32 2147483647, %v483
        %vm486 = vcmask 130048
        %v487 = vsel %vm486, %v262, 0.0
        %v488 = vsel %vm486, %v263, 0.0
        %v489 = vadd.f32 %v487, %v488
        %490 = vadd.xlane.f32.xlu0 %v489
        %v491 = vpop.xlane.xlu0 %490
        %v492 = vrot.slane %v491, 4
        %v493 = vadd.f32 %v491, %v492
        %v494 = vrot.slane %v493, 2
        %v495 = vadd.f32 %v493, %v494
        %v496 = vrot.slane %v495, 1
        %v497 = vadd.f32 %v495, %v496
        %s498 = vtos %v497
        %v499 = vsel %vm486, %v484, 0.0
        %v500 = vsel %vm486, %v485, 0.0
        %v501 = vadd.f32 %v499, %v500
        %502 = vadd.xlane.f32.xlu0 %v501
        %v503 = vpop.xlane.xlu0 %502
        %v504 = vrot.slane %v503, 4
        %v505 = vadd.f32 %v503, %v504
        %v506 = vrot.slane %v505, 2
        %v507 = vadd.f32 %v505, %v506
        %v508 = vrot.slane %v507, 1
        %v509 = vadd.f32 %v507, %v508
        %s510 = vtos %v509
        %v511 = vsel %vm486, %v268, 0.0
        %v512 = vsel %vm486, %v269, 0.0
        %v513 = vadd.f32 %v511, %v512
        %514 = vadd.xlane.f32.xlu0 %v513
        %v515 = vpop.xlane.xlu0 %514
        %v516 = vrot.slane %v515, 4
        %v517 = vadd.f32 %v515, %v516
        %v518 = vrot.slane %v517, 2
        %v519 = vadd.f32 %v517, %v518
        %v520 = vrot.slane %v519, 1
        %v521 = vadd.f32 %v519, %v520
        %s522 = vtos %v521
        %v523 = vlaneseq
        %v524 = vand.u32 %v523, 127
        %v525 = vlaneseq
        %v526 = vshrl.u32 %v525, 7
        %vm527 = vcmp.eq.s32.totalorder %v526, 0
        %vm528 = vcmp.eq.s32.totalorder %v524, 0
        %vm529 = vmand %vm527, %vm528
        %v530 = vstv %s498
        %v531 = vsel %vm529, %v530, 0.0
        %vm532 = vcmp.eq.s32.totalorder %v524, 1
        %vm533 = vmand %vm527, %vm532
        %v534 = vstv %s510
        %v535 = vsel %vm533, %v534, 0.0
        %v536 = vadd.f32 %v531, %v535
        %vm537 = vcmp.eq.s32.totalorder %v524, 2
        %vm538 = vmand %vm527, %vm537
        %v539 = vstv %s522
        %v540 = vsel %vm538, %v539, 0.0
        %v541 = vadd.f32 %v536, %v540
        %v542 = vld [vmem:[%s221] sm:$0xff]
        %v543 = vadd.f32 %v542, %v541
        %544 = vst [vmem:[%s221] sm:$0xff] %v543
        %p545 = scmp.lt.s32.totalorder %s23, 1
        %s546 = scalar_select %p545, %s23, 1
        %s547 = smul.addr %s546, 8
        %s548 = scalar_lea.vmem %s2, %s547
        // Predicated region
        $region41: #{_loss_components.1} parent=27 // pred_check
          %p549 = pneg %p105
        $region42: #{_loss_components.1} parent=27 // pred_check_branch
          %551 = sbr.rel (%p549) target = $region44
        $region43: #{_loss_components.1} parent=27 // pred_region
          _
        $region44: #{_loss_components.1} parent=27 // pred_fallthru
          _
      $region28: #{_loss_components.1} parent=5 // pred_fallthru
        _
      %p552 = scmp.le.s32.totalorder 2, %s14
      // Predicated region
      $region45: #{_loss_components.1} parent=5 // pred_check
        %p553 = pneg %p552
      $region46: #{_loss_components.1} parent=5 // pred_check_branch
        %555 = sbr.rel (%p553) target = $region48
      $region47: #{_loss_components.1} parent=5 // pred_region
        %s556 = ssub.s32 %s14, 2
        // Predicated region
        $region49: #{_loss_components.1} parent=47 // pred_check
          %p557 = pneg %p111
        $region50: #{_loss_components.1} parent=47 // pred_check_branch
          %559 = sbr.rel (%p557) target = $region52
        $region51: #{_loss_components.1} parent=47 // pred_region
          %p560 = scmp.lt.s32.totalorder %s25, 1
          %s561 = scalar_select %p560, %s25, 1
          %s562 = smul.addr %s561, 8
          %s563 = scalar_lea.vmem %s2, %s562
        $region52: #{_loss_components.1} parent=47 // pred_fallthru
          _
      $region48: #{_loss_components.1} parent=5 // pred_fallthru
        _
    $region6: #{_loss_components.1} parent=1 // loop_footer
      %s18 = sadd.s32 1, %s14
    $region7: #{_loss_components.1} parent=1 // loop_footer_branch
      %13 = sbr.rel target = $region3
    $region8: #{_loss_components.1} parent=1 // loop_exit
      _
    %564 = vsyncpa [#allocation5], 1
    %s565 = scalar_lea.sflag [#allocation5], 1
    %566 = vsyncpa %s565, 1
    %567 = vsyncpa [#allocation7], 1
    %s568 = scalar_lea.sflag [#allocation7], 1
    %569 = vsyncpa %s568, 1

</llo_original>
